<compile_context>
chip_gen: v5e
topology: v5e:2x2
jax: 0.10.0
libtpu: 0.0.40
codegen_flags: <defaults>
</compile_context>

<pallas_src>
import jax
import jax.numpy as jnp
from jax.experimental import pallas as pl
from jax.experimental.pallas import tpu as pltpu

K_IN = 784           # 28*28, unpadded (784 = 98 * 8, sublane-aligned for w1)
H1, H2 = 256, 128
N_OUT = 10
N_PAD = 128          # 10 padded to 128 -> lane-dense (unmasked) output stores


def fed_mlp_kernel(x_ref, w1_ref, b1_ref, w2_ref, b2_ref, w3_ref, b3_ref, o_ref):
    # x_ref: (TB, 784) bf16
    # w1: (784, 256) bf16   b1: (1, 256) f32
    # w2: (256, 128) bf16   b2: (1, 128) f32
    # w3: (128, 128) bf16   b3: (1, 128) f32   (cols 10..127 are zero)
    # o_ref: (TB, 128) bf16
    x = x_ref[...]

    # Linear(784->256) + ReLU   (bf16 MXU, f32 accumulate, f32 elementwise)
    h1 = jnp.dot(x, w1_ref[...], preferred_element_type=jnp.float32) + b1_ref[...]
    h1 = jnp.maximum(h1, 0.0).astype(jnp.bfloat16)

    # Linear(256->128) + ReLU
    h2 = jnp.dot(h1, w2_ref[...], preferred_element_type=jnp.float32) + b2_ref[...]
    h2 = jnp.maximum(h2, 0.0).astype(jnp.bfloat16)

    # Linear(128->10), padded to 128 output columns (zeros beyond col 9)
    out = jnp.dot(h2, w3_ref[...], preferred_element_type=jnp.float32) + b3_ref[...]
    o_ref[...] = out.astype(o_ref.dtype)


def _prep_weights(params):
    """Cast weights to bf16 (biases stay f32); pad only the last layer's N."""
    w1, b1, w2, b2, w3, b3 = params
    w3p = jnp.zeros((H2, N_PAD), jnp.float32).at[:, :N_OUT].set(w3).astype(jnp.bfloat16)
    b3p = jnp.zeros((1, N_PAD), jnp.float32).at[:, :N_OUT].set(b3)
    return (w1.astype(jnp.bfloat16), b1.astype(jnp.float32),
            w2.astype(jnp.bfloat16), b2.astype(jnp.float32),
            w3p, b3p)


def _choose_tile(B):
    """Adaptive batch tile (B is static at trace time).

    Small batches: round up to a multiple of 8 (sublane) -> single tile, no
    16x over-padding. Large batches: tb=512 (multiple of 256 fills the
    256x256 MXU on v6e/v7x, >=2 tiles lets v7x shard the parallel grid axis
    across both TensorCores, and VMEM stays far under the scoped limit).
    """
    b8 = ((B + 7) // 8) * 8
    return b8 if b8 <= 512 else 512


@jax.jit
def fed_model_forward(x, params):
    """x: (B, 1, 28, 28) float32 (NCHW). Returns logits (B, 10) float32."""
    B = x.shape[0]
    # nn.Flatten(); cast to bf16 BEFORE padding so no f32 pad buffer is ever
    # materialized in HBM.
    x_flat = x.reshape(B, -1).astype(jnp.bfloat16)          # (B, 784) bf16

    tb = _choose_tile(B)
    n_tiles = pl.cdiv(B, tb)
    b_pad = n_tiles * tb
    if b_pad != B:
        x_flat = jnp.pad(x_flat, ((0, b_pad - B), (0, 0)))  # bf16 pad only

    w1, b1, w2, b2, w3p, b3p = _prep_weights(params)

    # Weights/biases: full-array blocks, constant index_map -> resident in VMEM
    # across the whole batch grid (DMA'd exactly once).
    resident = lambda a: pl.BlockSpec(a.shape, lambda i: (0, 0))

    flops = 2 * b_pad * (K_IN * H1 + H1 * H2 + H2 * N_PAD)
    bytes_accessed = (
        x_flat.size * 2
        + (w1.size + w2.size + w3p.size) * 2
        + (b1.size + b2.size + b3p.size) * 4
        + b_pad * N_PAD * 2
    )

    out = pl.pallas_call(
        fed_mlp_kernel,
        out_shape=jax.ShapeDtypeStruct((b_pad, N_PAD), jnp.bfloat16),
        grid=(n_tiles,),
        in_specs=[
            pl.BlockSpec((tb, K_IN), lambda i: (i, 0)),    # x: batch-tiled
            resident(w1), resident(b1),
            resident(w2), resident(b2),
            resident(w3p), resident(b3p),
        ],
        out_specs=pl.BlockSpec((tb, N_PAD), lambda i: (i, 0)),
        compiler_params=pltpu.CompilerParams(
            dimension_semantics=("parallel",),             # v7x: shard across TCs
        ),
        cost_estimate=pl.CostEstimate(
            flops=flops, transcendentals=0, bytes_accessed=bytes_accessed),
    )(x_flat, w1, b1, w2, b2, w3p, b3p)

    return out[:B, :N_OUT].astype(jnp.float32)


def init_params(key):
    """Deterministic init matching nn.Linear default (U(-1/sqrt(fan_in), +))."""
    def linear(key, fan_in, fan_out):
        kw, kb = jax.random.split(key)
        bound = 1.0 / jnp.sqrt(fan_in)
        w = jax.random.uniform(kw, (fan_in, fan_out), jnp.float32, -bound, bound)
        b = jax.random.uniform(kb, (1, fan_out), jnp.float32, -bound, bound)
        return w, b

    k1, k2, k3 = jax.random.split(key, 3)
    w1, b1 = linear(k1, K_IN, H1)
    w2, b2 = linear(k2, H1, H2)
    w3, b3 = linear(k3, H2, N_OUT)
    return (w1, b1, w2, b2, w3, b3)


if __name__ == "__main__":
    key = jax.random.PRNGKey(0)
    kx, kp = jax.random.split(key)

    # MNIST-like input: batch=8, NCHW (8, 1, 28, 28)
    x = jax.random.normal(kx, (8, 1, 28, 28), dtype=jnp.float32)
    params = init_params(kp)

    logits = fed_model_forward(x, params)
    jax.block_until_ready(logits)
    assert logits.shape == (8, 10)
    assert logits.dtype == jnp.float32

    # Reference 1: mirror of the kernel's bf16-weights / f32-accumulate math
    # (output additionally rounds through bf16 in the kernel).
    w1, b1, w2, b2, w3, b3 = params
    xf = x.reshape(8, -1)
    h = jnp.dot(xf.astype(jnp.bfloat16), w1.astype(jnp.bfloat16),
                preferred_element_type=jnp.float32) + b1
    h = jnp.maximum(h, 0.0).astype(jnp.bfloat16)
    h = jnp.dot(h, w2.astype(jnp.bfloat16),
                preferred_element_type=jnp.float32) + b2
    h = jnp.maximum(h, 0.0).astype(jnp.bfloat16)
    ref_bf16 = jnp.dot(h, w3.astype(jnp.bfloat16),
                       preferred_element_type=jnp.float32) + b3
    assert jnp.allclose(logits, ref_bf16, atol=5e-2, rtol=5e-2)

    # Reference 2: full-f32 PyTorch-equivalent forward (coarser tolerance
    # since the kernel runs bf16 matmuls and stores bf16 logits).
    ref_f32 = jnp.maximum(xf @ w1 + b1, 0.0)
    ref_f32 = jnp.maximum(ref_f32 @ w2 + b2, 0.0)
    ref_f32 = ref_f32 @ w3 + b3
    assert jnp.allclose(logits, ref_f32, atol=2e-1, rtol=2e-1)

    print("KERNEL_OK")
</pallas_src>

<mosaic_0001>
module attributes {stable_mosaic.version = 11 : i64} {
  func.func @fed_mlp_kernel(%arg0: i32, %arg1: memref<8x784xbf16, #tpu.memory_space<vmem>>, %arg2: memref<784x256xbf16, #tpu.memory_space<vmem>>, %arg3: memref<1x256xf32, #tpu.memory_space<vmem>>, %arg4: memref<256x128xbf16, #tpu.memory_space<vmem>>, %arg5: memref<1x128xf32, #tpu.memory_space<vmem>>, %arg6: memref<128x128xbf16, #tpu.memory_space<vmem>>, %arg7: memref<1x128xf32, #tpu.memory_space<vmem>>, %arg8: memref<8x128xbf16, #tpu.memory_space<vmem>>) attributes {dimension_semantics = [#tpu.dimension_semantics<parallel>], iteration_bounds = array<i64: 1>, scalar_prefetch = 0 : i64, scratch_operands = 0 : i64, tpu.core_type = #tpu.core_type<tc>, window_params = [{transform_indices = @transform_0, window_bounds = array<i64: 8, 784>}, {pipeline_mode = #tpu.pipeline_mode<synchronous>, transform_indices = @transform_1, window_bounds = array<i64: 784, 256>}, {pipeline_mode = #tpu.pipeline_mode<synchronous>, transform_indices = @transform_2, window_bounds = array<i64: 1, 256>}, {pipeline_mode = #tpu.pipeline_mode<synchronous>, transform_indices = @transform_3, window_bounds = array<i64: 256, 128>}, {pipeline_mode = #tpu.pipeline_mode<synchronous>, transform_indices = @transform_4, window_bounds = array<i64: 1, 128>}, {pipeline_mode = #tpu.pipeline_mode<synchronous>, transform_indices = @transform_5, window_bounds = array<i64: 128, 128>}, {pipeline_mode = #tpu.pipeline_mode<synchronous>, transform_indices = @transform_6, window_bounds = array<i64: 1, 128>}, {transform_indices = @transform_7, window_bounds = array<i64: 8, 128>}]} {
    %c0 = arith.constant 0 : index
    %c0_0 = arith.constant 0 : index
    %0 = vector.load %arg1[%c0, %c0_0] : memref<8x784xbf16, #tpu.memory_space<vmem>>, vector<8x784xbf16>
    %c0_1 = arith.constant 0 : index
    %c0_2 = arith.constant 0 : index
    %1 = vector.load %arg2[%c0_1, %c0_2] : memref<784x256xbf16, #tpu.memory_space<vmem>>, vector<784x256xbf16>
    %cst = arith.constant dense<0.000000e+00> : vector<8x256xf32>
    %2 = tpu.matmul %0, %1, %cst {dimension_numbers = #tpu.dot_dimension_numbers<[1], [0], [0], [1], [0, 0, 1, 1], [], []>} : vector<8x784xbf16>, vector<784x256xbf16>, vector<8x256xf32> -> vector<8x256xf32>
    %c0_3 = arith.constant 0 : index
    %c0_4 = arith.constant 0 : index
    %3 = vector.load %arg3[%c0_3, %c0_4] : memref<1x256xf32, #tpu.memory_space<vmem>>, vector<1x256xf32>
    %4 = vector.broadcast %3 : vector<1x256xf32> to vector<8x256xf32>
    %5 = arith.addf %2, %4 : vector<8x256xf32>
    %cst_5 = arith.constant 0.000000e+00 : f32
    %6 = vector.broadcast %cst_5 : f32 to vector<8x256xf32>
    %7 = arith.maximumf %5, %6 : vector<8x256xf32>
    %8 = arith.truncf %7 : vector<8x256xf32> to vector<8x256xbf16>
    %c0_6 = arith.constant 0 : index
    %c0_7 = arith.constant 0 : index
    %9 = vector.load %arg4[%c0_6, %c0_7] : memref<256x128xbf16, #tpu.memory_space<vmem>>, vector<256x128xbf16>
    %cst_8 = arith.constant dense<0.000000e+00> : vector<8x128xf32>
    %10 = tpu.matmul %8, %9, %cst_8 {dimension_numbers = #tpu.dot_dimension_numbers<[1], [0], [0], [1], [0, 0, 1, 1], [], []>} : vector<8x256xbf16>, vector<256x128xbf16>, vector<8x128xf32> -> vector<8x128xf32>
    %c0_9 = arith.constant 0 : index
    %c0_10 = arith.constant 0 : index
    %11 = vector.load %arg5[%c0_9, %c0_10] : memref<1x128xf32, #tpu.memory_space<vmem>>, vector<1x128xf32>
    %12 = vector.broadcast %11 : vector<1x128xf32> to vector<8x128xf32>
    %13 = arith.addf %10, %12 : vector<8x128xf32>
    %cst_11 = arith.constant 0.000000e+00 : f32
    %14 = vector.broadcast %cst_11 : f32 to vector<8x128xf32>
    %15 = arith.maximumf %13, %14 : vector<8x128xf32>
    %16 = arith.truncf %15 : vector<8x128xf32> to vector<8x128xbf16>
    %c0_12 = arith.constant 0 : index
    %c0_13 = arith.constant 0 : index
    %17 = vector.load %arg6[%c0_12, %c0_13] : memref<128x128xbf16, #tpu.memory_space<vmem>>, vector<128x128xbf16>
    %cst_14 = arith.constant dense<0.000000e+00> : vector<8x128xf32>
    %18 = tpu.matmul %16, %17, %cst_14 {dimension_numbers = #tpu.dot_dimension_numbers<[1], [0], [0], [1], [0, 0, 1, 1], [], []>} : vector<8x128xbf16>, vector<128x128xbf16>, vector<8x128xf32> -> vector<8x128xf32>
    %c0_15 = arith.constant 0 : index
    %c0_16 = arith.constant 0 : index
    %19 = vector.load %arg7[%c0_15, %c0_16] : memref<1x128xf32, #tpu.memory_space<vmem>>, vector<1x128xf32>
    %20 = vector.broadcast %19 : vector<1x128xf32> to vector<8x128xf32>
    %21 = arith.addf %18, %20 : vector<8x128xf32>
    %22 = arith.truncf %21 : vector<8x128xf32> to vector<8x128xbf16>
    %c0_17 = arith.constant 0 : index
    %c0_18 = arith.constant 0 : index
    %23 = vector.load %arg8[%c0_17, %c0_18] : memref<8x128xbf16, #tpu.memory_space<vmem>>, vector<8x128xbf16>
    tpu.vector_store %arg8[%c0_17, %c0_18], %22 {strides = array<i32>} : memref<8x128xbf16, #tpu.memory_space<vmem>>, vector<8x128xbf16>,
    return
  }
  func.func @transform_0(%arg0: i32) -> (i32, i32) {
    %c0_i32 = arith.constant 0 : i32
    %c0_i32_0 = arith.constant 0 : i32
    return %arg0, %c0_i32 : i32, i32
  }
  func.func @transform_1(%arg0: i32) -> (i32, i32) {
    %c0_i32 = arith.constant 0 : i32
    %c0_i32_0 = arith.constant 0 : i32
    %c0_i32_1 = arith.constant 0 : i32
    return %c0_i32, %c0_i32_0 : i32, i32
  }
  func.func @transform_2(%arg0: i32) -> (i32, i32) {
    %c0_i32 = arith.constant 0 : i32
    %c0_i32_0 = arith.constant 0 : i32
    %c0_i32_1 = arith.constant 0 : i32
    return %c0_i32, %c0_i32_0 : i32, i32
  }
  func.func @transform_3(%arg0: i32) -> (i32, i32) {
    %c0_i32 = arith.constant 0 : i32
    %c0_i32_0 = arith.constant 0 : i32
    %c0_i32_1 = arith.constant 0 : i32
    return %c0_i32, %c0_i32_0 : i32, i32
  }
  func.func @transform_4(%arg0: i32) -> (i32, i32) {
    %c0_i32 = arith.constant 0 : i32
    %c0_i32_0 = arith.constant 0 : i32
    %c0_i32_1 = arith.constant 0 : i32
    return %c0_i32, %c0_i32_0 : i32, i32
  }
  func.func @transform_5(%arg0: i32) -> (i32, i32) {
    %c0_i32 = arith.constant 0 : i32
    %c0_i32_0 = arith.constant 0 : i32
    %c0_i32_1 = arith.constant 0 : i32
    return %c0_i32, %c0_i32_0 : i32, i32
  }
  func.func @transform_6(%arg0: i32) -> (i32, i32) {
    %c0_i32 = arith.constant 0 : i32
    %c0_i32_0 = arith.constant 0 : i32
    %c0_i32_1 = arith.constant 0 : i32
    return %c0_i32, %c0_i32_0 : i32, i32
  }
  func.func @transform_7(%arg0: i32) -> (i32, i32) {
    %c0_i32 = arith.constant 0 : i32
    %c0_i32_0 = arith.constant 0 : i32
    return %arg0, %c0_i32 : i32, i32
  }
}

</mosaic_0001>

<llo_original>
// kernel: fed_model_forward.1
$region0: #{fed_model_forward.1}
  #allocation0 [shape = 'u32[]', space=smem, size = 0x4, offset = 0x4, fixed_abs, tag = 'smem constant byte address 0x4 - core index']
  #allocation1 [shape = 'u32[72,128]{1,0:T(1,128)}', space=vmem, size = 0x9000, scoped, tag = 'internal scratch']
  %s0 = inlined_call_operand.vmem [shape: bf16[8,784], index: 0, kind: input, shape index: {}]
  %s1 = inlined_call_operand.vmem [shape: bf16[784,256], index: 1, kind: input, shape index: {}]
  %s2 = inlined_call_operand.vmem [shape: f32[1,256], index: 2, kind: input, shape index: {}]
  %s3 = inlined_call_operand.vmem [shape: bf16[256,128], index: 3, kind: input, shape index: {}]
  %s4 = inlined_call_operand.vmem [shape: f32[1,128], index: 4, kind: input, shape index: {}]
  %s5 = inlined_call_operand.vmem [shape: bf16[128,128], index: 5, kind: input, shape index: {}]
  %s6 = inlined_call_operand.vmem [shape: f32[1,128], index: 6, kind: input, shape index: {}]
  %s7 = inlined_call_operand.vmem [shape: bf16[8,128], index: 7, kind: output, shape index: {}]
  %s8 = sld [smem:[#allocation0]]
  $region38: #{fed_model_forward.1} parent=0
    _
  %s10 = ssub.s32 1, %s8
  %s11 = scalar_select 0, %s10, %s8
  // Predicated region
  $region2: #{fed_model_forward.1} parent=0 // pred_check
    _
  $region3: #{fed_model_forward.1} parent=0 // pred_check_branch
    %13 = sbr.rel (0) target = $region5
  $region4: #{fed_model_forward.1} parent=0 // pred_region
    _
  $region5: #{fed_model_forward.1} parent=0 // pred_fallthru
    _
  // Predicated region
  $region6: #{fed_model_forward.1} parent=0 // pred_check
    _
  $region7: #{fed_model_forward.1} parent=0 // pred_check_branch
    %15 = sbr.rel (0) target = $region9
  $region8: #{fed_model_forward.1} parent=0 // pred_region
    _
  $region9: #{fed_model_forward.1} parent=0 // pred_fallthru
    _
  // Predicated region
  $region10: #{fed_model_forward.1} parent=0 // pred_check
    _
  $region11: #{fed_model_forward.1} parent=0 // pred_check_branch
    %17 = sbr.rel (0) target = $region13
  $region12: #{fed_model_forward.1} parent=0 // pred_region
    _
  $region13: #{fed_model_forward.1} parent=0 // pred_fallthru
    _
  // Predicated region
  $region14: #{fed_model_forward.1} parent=0 // pred_check
    _
  $region15: #{fed_model_forward.1} parent=0 // pred_check_branch
    %19 = sbr.rel (0) target = $region17
  $region16: #{fed_model_forward.1} parent=0 // pred_region
    _
  $region17: #{fed_model_forward.1} parent=0 // pred_fallthru
    _
  // Predicated region
  $region18: #{fed_model_forward.1} parent=0 // pred_check
    _
  $region19: #{fed_model_forward.1} parent=0 // pred_check_branch
    %21 = sbr.rel (0) target = $region21
  $region20: #{fed_model_forward.1} parent=0 // pred_region
    _
  $region21: #{fed_model_forward.1} parent=0 // pred_fallthru
    _
  // Predicated region
  $region22: #{fed_model_forward.1} parent=0 // pred_check
    _
  $region23: #{fed_model_forward.1} parent=0 // pred_check_branch
    %23 = sbr.rel (0) target = $region25
  $region24: #{fed_model_forward.1} parent=0 // pred_region
    _
  $region25: #{fed_model_forward.1} parent=0 // pred_fallthru
    _
  // Predicated region
  $region26: #{fed_model_forward.1} parent=0 // pred_check
    _
  $region27: #{fed_model_forward.1} parent=0 // pred_check_branch
    %25 = sbr.rel (0) target = $region29
  $region28: #{fed_model_forward.1} parent=0 // pred_region
    _
  $region29: #{fed_model_forward.1} parent=0 // pred_fallthru
    _
  %v27 = vld [vmem:[%s0] sm:$0xff]
  %v28 = vld [vmem:[%s0 + $0x8] sm:$0xff]
  %v29 = vld [vmem:[%s0 + $0x10] sm:$0xff]
  %v30 = vld [vmem:[%s0 + $0x18] sm:$0xf]
  %v31 = vld [vmem:[%s1] sm:$0xff]
  %v32 = vld [vmem:[%s1 + $0x8] sm:$0xff]
  %v33 = vld [vmem:[%s1 + $0x10] sm:$0xff]
  %v34 = vld [vmem:[%s1 + $0x18] sm:$0xff]
  %v35 = vld [vmem:[%s1 + $0x20] sm:$0xff]
  %v36 = vld [vmem:[%s1 + $0x28] sm:$0xff]
  %v37 = vld [vmem:[%s1 + $0x30] sm:$0xff]
  %v38 = vld [vmem:[%s1 + $0x38] sm:$0xff]
  %v39 = vld [vmem:[%s1 + $0x40] sm:$0xff]
  %v40 = vld [vmem:[%s1 + $0x48] sm:$0xff]
  %v41 = vld [vmem:[%s1 + $0x50] sm:$0xff]
  %v42 = vld [vmem:[%s1 + $0x58] sm:$0xff]
  %v43 = vld [vmem:[%s1 + $0x60] sm:$0xff]
  %v44 = vld [vmem:[%s1 + $0x68] sm:$0xff]
  %v45 = vld [vmem:[%s1 + $0x70] sm:$0xff]
  %v46 = vld [vmem:[%s1 + $0x78] sm:$0xff]
  %v47 = vld [vmem:[%s1 + $0x80] sm:$0xff]
  %v48 = vld [vmem:[%s1 + $0x88] sm:$0xff]
  %v49 = vld [vmem:[%s1 + $0x90] sm:$0xff]
  %v50 = vld [vmem:[%s1 + $0x98] sm:$0xff]
  %v51 = vld [vmem:[%s1 + $0xa0] sm:$0xff]
  %v52 = vld [vmem:[%s1 + $0xa8] sm:$0xff]
  %v53 = vld [vmem:[%s1 + $0xb0] sm:$0xff]
  %v54 = vld [vmem:[%s1 + $0xb8] sm:$0xff]
  %v55 = vld [vmem:[%s1 + $0xc0] sm:$0xff]
  %v56 = vld [vmem:[%s1 + $0xc8] sm:$0xff]
  %v57 = vld [vmem:[%s1 + $0xd0] sm:$0xff]
  %v58 = vld [vmem:[%s1 + $0xd8] sm:$0xff]
  %v59 = vld [vmem:[%s1 + $0xe0] sm:$0xff]
  %v60 = vld [vmem:[%s1 + $0xe8] sm:$0xff]
  %v61 = vld [vmem:[%s1 + $0xf0] sm:$0xff]
  %v62 = vld [vmem:[%s1 + $0xf8] sm:$0xff]
  %v63 = vld [vmem:[%s1 + $0x100] sm:$0xff]
  %v64 = vld [vmem:[%s1 + $0x108] sm:$0xff]
  %v65 = vld [vmem:[%s1 + $0x110] sm:$0xff]
  %v66 = vld [vmem:[%s1 + $0x118] sm:$0xff]
  %v67 = vld [vmem:[%s1 + $0x120] sm:$0xff]
  %v68 = vld [vmem:[%s1 + $0x128] sm:$0xff]
  %v69 = vld [vmem:[%s1 + $0x130] sm:$0xff]
  %v70 = vld [vmem:[%s1 + $0x138] sm:$0xff]
  %v71 = vld [vmem:[%s1 + $0x140] sm:$0xff]
  %v72 = vld [vmem:[%s1 + $0x148] sm:$0xff]
  %v73 = vld [vmem:[%s1 + $0x150] sm:$0xff]
  %v74 = vld [vmem:[%s1 + $0x158] sm:$0xff]
  %v75 = vld [vmem:[%s1 + $0x160] sm:$0xff]
  %v76 = vld [vmem:[%s1 + $0x168] sm:$0xff]
  %v77 = vld [vmem:[%s1 + $0x170] sm:$0xff]
  %v78 = vld [vmem:[%s1 + $0x178] sm:$0xff]
  %v79 = vld [vmem:[%s1 + $0x180] sm:$0xff]
  %v80 = vld [vmem:[%s1 + $0x188] sm:$0xff]
  %v81 = vld [vmem:[%s1 + $0x190] sm:$0xff]
  %v82 = vld [vmem:[%s1 + $0x198] sm:$0xff]
  %v83 = vld [vmem:[%s1 + $0x1a0] sm:$0xff]
  %v84 = vld [vmem:[%s1 + $0x1a8] sm:$0xff]
  %v85 = vld [vmem:[%s1 + $0x1b0] sm:$0xff]
  %v86 = vld [vmem:[%s1 + $0x1b8] sm:$0xff]
  %v87 = vld [vmem:[%s1 + $0x1c0] sm:$0xff]
  %v88 = vld [vmem:[%s1 + $0x1c8] sm:$0xff]
  %v89 = vld [vmem:[%s1 + $0x1d0] sm:$0xff]
  %v90 = vld [vmem:[%s1 + $0x1d8] sm:$0xff]
  %v91 = vld [vmem:[%s1 + $0x1e0] sm:$0xff]
  %v92 = vld [vmem:[%s1 + $0x1e8] sm:$0xff]
  %v93 = vld [vmem:[%s1 + $0x1f0] sm:$0xff]
  %v94 = vld [vmem:[%s1 + $0x1f8] sm:$0xff]
  %v95 = vld [vmem:[%s1 + $0x200] sm:$0xff]
  %v96 = vld [vmem:[%s1 + $0x208] sm:$0xff]
  %v97 = vld [vmem:[%s1 + $0x210] sm:$0xff]
  %v98 = vld [vmem:[%s1 + $0x218] sm:$0xff]
  %v99 = vld [vmem:[%s1 + $0x220] sm:$0xff]
  %v100 = vld [vmem:[%s1 + $0x228] sm:$0xff]
  %v101 = vld [vmem:[%s1 + $0x230] sm:$0xff]
  %v102 = vld [vmem:[%s1 + $0x238] sm:$0xff]
  %v103 = vld [vmem:[%s1 + $0x240] sm:$0xff]
  %v104 = vld [vmem:[%s1 + $0x248] sm:$0xff]
  %v105 = vld [vmem:[%s1 + $0x250] sm:$0xff]
  %v106 = vld [vmem:[%s1 + $0x258] sm:$0xff]
  %v107 = vld [vmem:[%s1 + $0x260] sm:$0xff]
  %v108 = vld [vmem:[%s1 + $0x268] sm:$0xff]
  %v109 = vld [vmem:[%s1 + $0x270] sm:$0xff]
  %v110 = vld [vmem:[%s1 + $0x278] sm:$0xff]
  %v111 = vld [vmem:[%s1 + $0x280] sm:$0xff]
  %v112 = vld [vmem:[%s1 + $0x288] sm:$0xff]
  %v113 = vld [vmem:[%s1 + $0x290] sm:$0xff]
  %v114 = vld [vmem:[%s1 + $0x298] sm:$0xff]
  %v115 = vld [vmem:[%s1 + $0x2a0] sm:$0xff]
  %v116 = vld [vmem:[%s1 + $0x2a8] sm:$0xff]
  %v117 = vld [vmem:[%s1 + $0x2b0] sm:$0xff]
  %v118 = vld [vmem:[%s1 + $0x2b8] sm:$0xff]
  %v119 = vld [vmem:[%s1 + $0x2c0] sm:$0xff]
  %v120 = vld [vmem:[%s1 + $0x2c8] sm:$0xff]
  %v121 = vld [vmem:[%s1 + $0x2d0] sm:$0xff]
  %v122 = vld [vmem:[%s1 + $0x2d8] sm:$0xff]
  %v123 = vld [vmem:[%s1 + $0x2e0] sm:$0xff]
  %v124 = vld [vmem:[%s1 + $0x2e8] sm:$0xff]
  %v125 = vld [vmem:[%s1 + $0x2f0] sm:$0xff]
  %v126 = vld [vmem:[%s1 + $0x2f8] sm:$0xff]
  %v127 = vld [vmem:[%s1 + $0x300] sm:$0xff]
  %v128 = vld [vmem:[%s1 + $0x308] sm:$0xff]
  %v129 = vld [vmem:[%s2] sm:$0x3]
  %v131 = vperm.slane %v129, 0
  %v132 = vperm.slane %v129, 1
  %v139 = vunpack.c.l.b16 %v27
  %v140 = vunpack.c.h.b16 %v27
  %v141 = vunpack.c.l.b16 %v28
  %v142 = vunpack.c.h.b16 %v28
  %v143 = vunpack.c.l.b16 %v29
  %v144 = vunpack.c.h.b16 %v29
  %v145 = vunpack.c.l.b16 %v30
  %v146 = vpack.c.b16 %v139, %v139
  %v147 = vpack.c.b16 %v140, %v140
  %v148 = vpack.c.b16 %v141, %v141
  %v149 = vpack.c.b16 %v142, %v142
  %v150 = vpack.c.b16 %v143, %v143
  %v151 = vpack.c.b16 %v144, %v144
  %v152 = vpack.c.b16 %v145, %v145
  %v257 = vunpack.c.l.b16 %v31
  %v258 = vunpack.c.h.b16 %v31
  %v259 = vunpack.c.l.b16 %v32
  %v260 = vunpack.c.h.b16 %v32
  %v261 = vunpack.c.l.b16 %v33
  %v262 = vunpack.c.h.b16 %v33
  %v263 = vunpack.c.l.b16 %v34
  %v264 = vunpack.c.h.b16 %v34
  %v265 = vunpack.c.l.b16 %v35
  %v266 = vunpack.c.h.b16 %v35
  %v267 = vunpack.c.l.b16 %v36
  %v268 = vunpack.c.h.b16 %v36
  %v269 = vunpack.c.l.b16 %v37
  %v270 = vunpack.c.h.b16 %v37
  %v271 = vunpack.c.l.b16 %v38
  %v272 = vunpack.c.h.b16 %v38
  %v273 = vunpack.c.l.b16 %v39
  %v274 = vunpack.c.h.b16 %v39
  %v275 = vunpack.c.l.b16 %v40
  %v276 = vunpack.c.h.b16 %v40
  %v277 = vunpack.c.l.b16 %v41
  %v278 = vunpack.c.h.b16 %v41
  %v279 = vunpack.c.l.b16 %v42
  %v280 = vunpack.c.h.b16 %v42
  %v281 = vunpack.c.l.b16 %v43
  %v282 = vunpack.c.h.b16 %v43
  %v283 = vunpack.c.l.b16 %v44
  %v284 = vunpack.c.h.b16 %v44
  %v285 = vunpack.c.l.b16 %v45
  %v286 = vunpack.c.h.b16 %v45
  %v287 = vunpack.c.l.b16 %v46
  %v288 = vunpack.c.h.b16 %v46
  %v289 = vunpack.c.l.b16 %v47
  %v290 = vunpack.c.h.b16 %v47
  %v291 = vunpack.c.l.b16 %v48
  %v292 = vunpack.c.h.b16 %v48
  %v293 = vunpack.c.l.b16 %v49
  %v294 = vunpack.c.h.b16 %v49
  %v295 = vunpack.c.l.b16 %v50
  %v296 = vunpack.c.h.b16 %v50
  %v297 = vunpack.c.l.b16 %v51
  %v298 = vunpack.c.h.b16 %v51
  %v299 = vunpack.c.l.b16 %v52
  %v300 = vunpack.c.h.b16 %v52
  %v301 = vunpack.c.l.b16 %v53
  %v302 = vunpack.c.h.b16 %v53
  %v303 = vunpack.c.l.b16 %v54
  %v304 = vunpack.c.h.b16 %v54
  %v305 = vunpack.c.l.b16 %v55
  %v306 = vunpack.c.h.b16 %v55
  %v307 = vunpack.c.l.b16 %v56
  %v308 = vunpack.c.h.b16 %v56
  %v309 = vunpack.c.l.b16 %v57
  %v310 = vunpack.c.h.b16 %v57
  %v311 = vunpack.c.l.b16 %v58
  %v312 = vunpack.c.h.b16 %v58
  %v313 = vunpack.c.l.b16 %v59
  %v314 = vunpack.c.h.b16 %v59
  %v315 = vunpack.c.l.b16 %v60
  %v316 = vunpack.c.h.b16 %v60
  %v317 = vunpack.c.l.b16 %v61
  %v318 = vunpack.c.h.b16 %v61
  %v319 = vunpack.c.l.b16 %v62
  %v320 = vunpack.c.h.b16 %v62
  %v321 = vunpack.c.l.b16 %v63
  %v322 = vunpack.c.h.b16 %v63
  %v323 = vunpack.c.l.b16 %v64
  %v324 = vunpack.c.h.b16 %v64
  %v325 = vunpack.c.l.b16 %v65
  %v326 = vunpack.c.h.b16 %v65
  %v327 = vunpack.c.l.b16 %v66
  %v328 = vunpack.c.h.b16 %v66
  %v329 = vunpack.c.l.b16 %v67
  %v330 = vunpack.c.h.b16 %v67
  %v331 = vunpack.c.l.b16 %v68
  %v332 = vunpack.c.h.b16 %v68
  %v333 = vunpack.c.l.b16 %v69
  %v334 = vunpack.c.h.b16 %v69
  %v335 = vunpack.c.l.b16 %v70
  %v336 = vunpack.c.h.b16 %v70
  %v337 = vunpack.c.l.b16 %v71
  %v338 = vunpack.c.h.b16 %v71
  %v339 = vunpack.c.l.b16 %v72
  %v340 = vunpack.c.h.b16 %v72
  %v341 = vunpack.c.l.b16 %v73
  %v342 = vunpack.c.h.b16 %v73
  %v343 = vunpack.c.l.b16 %v74
  %v344 = vunpack.c.h.b16 %v74
  %v345 = vunpack.c.l.b16 %v75
  %v346 = vunpack.c.h.b16 %v75
  %v347 = vunpack.c.l.b16 %v76
  %v348 = vunpack.c.h.b16 %v76
  %v349 = vunpack.c.l.b16 %v77
  %v350 = vunpack.c.h.b16 %v77
  %v351 = vunpack.c.l.b16 %v78
  %v352 = vunpack.c.h.b16 %v78
  %v353 = vunpack.c.l.b16 %v79
  %v354 = vunpack.c.h.b16 %v79
  %v355 = vunpack.c.l.b16 %v80
  %v356 = vunpack.c.h.b16 %v80
  %v357 = vunpack.c.l.b16 %v81
  %v358 = vunpack.c.h.b16 %v81
  %v359 = vunpack.c.l.b16 %v82
  %v360 = vunpack.c.h.b16 %v82
  %v361 = vunpack.c.l.b16 %v83
  %v362 = vunpack.c.h.b16 %v83
  %v363 = vunpack.c.l.b16 %v84
  %v364 = vunpack.c.h.b16 %v84
  %v365 = vunpack.c.l.b16 %v85
  %v366 = vunpack.c.h.b16 %v85
  %v367 = vunpack.c.l.b16 %v86
  %v368 = vunpack.c.h.b16 %v86
  %v369 = vunpack.c.l.b16 %v87
  %v370 = vunpack.c.h.b16 %v87
  %v371 = vunpack.c.l.b16 %v88
  %v372 = vunpack.c.h.b16 %v88
  %v373 = vunpack.c.l.b16 %v89
  %v374 = vunpack.c.h.b16 %v89
  %v375 = vunpack.c.l.b16 %v90
  %v376 = vunpack.c.h.b16 %v90
  %v377 = vunpack.c.l.b16 %v91
  %v378 = vunpack.c.h.b16 %v91
  %v379 = vunpack.c.l.b16 %v92
  %v380 = vunpack.c.h.b16 %v92
  %v381 = vunpack.c.l.b16 %v93
  %v382 = vunpack.c.h.b16 %v93
  %v383 = vunpack.c.l.b16 %v94
  %v384 = vunpack.c.h.b16 %v94
  %v385 = vunpack.c.l.b16 %v95
  %v386 = vunpack.c.h.b16 %v95
  %v387 = vunpack.c.l.b16 %v96
  %v388 = vunpack.c.h.b16 %v96
  %v389 = vunpack.c.l.b16 %v97
  %v390 = vunpack.c.h.b16 %v97
  %v391 = vunpack.c.l.b16 %v98
  %v392 = vunpack.c.h.b16 %v98
  %v393 = vunpack.c.l.b16 %v99
  %v394 = vunpack.c.h.b16 %v99
  %v395 = vunpack.c.l.b16 %v100
  %v396 = vunpack.c.h.b16 %v100
  %v397 = vunpack.c.l.b16 %v101
  %v398 = vunpack.c.h.b16 %v101
  %v399 = vunpack.c.l.b16 %v102
  %v400 = vunpack.c.h.b16 %v102
  %v401 = vunpack.c.l.b16 %v103
  %v402 = vunpack.c.h.b16 %v103
  %v403 = vunpack.c.l.b16 %v104
  %v404 = vunpack.c.h.b16 %v104
  %v405 = vunpack.c.l.b16 %v105
  %v406 = vunpack.c.h.b16 %v105
  %v407 = vunpack.c.l.b16 %v106
  %v408 = vunpack.c.h.b16 %v106
  %v409 = vunpack.c.l.b16 %v107
  %v410 = vunpack.c.h.b16 %v107
  %v411 = vunpack.c.l.b16 %v108
  %v412 = vunpack.c.h.b16 %v108
  %v413 = vunpack.c.l.b16 %v109
  %v414 = vunpack.c.h.b16 %v109
  %v415 = vunpack.c.l.b16 %v110
  %v416 = vunpack.c.h.b16 %v110
  %v417 = vunpack.c.l.b16 %v111
  %v418 = vunpack.c.h.b16 %v111
  %v419 = vunpack.c.l.b16 %v112
  %v420 = vunpack.c.h.b16 %v112
  %v421 = vunpack.c.l.b16 %v113
  %v422 = vunpack.c.h.b16 %v113
  %v423 = vunpack.c.l.b16 %v114
  %v424 = vunpack.c.h.b16 %v114
  %v425 = vunpack.c.l.b16 %v115
  %v426 = vunpack.c.h.b16 %v115
  %v427 = vunpack.c.l.b16 %v116
  %v428 = vunpack.c.h.b16 %v116
  %v429 = vunpack.c.l.b16 %v117
  %v430 = vunpack.c.h.b16 %v117
  %v431 = vunpack.c.l.b16 %v118
  %v432 = vunpack.c.h.b16 %v118
  %v433 = vunpack.c.l.b16 %v119
  %v434 = vunpack.c.h.b16 %v119
  %v435 = vunpack.c.l.b16 %v120
  %v436 = vunpack.c.h.b16 %v120
  %v437 = vunpack.c.l.b16 %v121
  %v438 = vunpack.c.h.b16 %v121
  %v439 = vunpack.c.l.b16 %v122
  %v440 = vunpack.c.h.b16 %v122
  %v441 = vunpack.c.l.b16 %v123
  %v442 = vunpack.c.h.b16 %v123
  %v443 = vunpack.c.l.b16 %v124
  %v444 = vunpack.c.h.b16 %v124
  %v445 = vunpack.c.l.b16 %v125
  %v446 = vunpack.c.h.b16 %v125
  %v447 = vunpack.c.l.b16 %v126
  %v448 = vunpack.c.h.b16 %v126
  %v449 = vunpack.c.l.b16 %v127
  %v450 = vunpack.c.h.b16 %v127
  %v451 = vunpack.c.l.b16 %v128
  %v452 = vunpack.c.h.b16 %v128
  %v453 = vpack.c.b16 %v259, %v257
  %v454 = vpack.c.b16 %v260, %v258
  %v455 = vpack.c.b16 %v263, %v261
  %v456 = vpack.c.b16 %v264, %v262
  %v457 = vpack.c.b16 %v267, %v265
  %v458 = vpack.c.b16 %v268, %v266
  %v459 = vpack.c.b16 %v271, %v269
  %v460 = vpack.c.b16 %v272, %v270
  %v461 = vpack.c.b16 %v275, %v273
  %v462 = vpack.c.b16 %v276, %v274
  %v463 = vpack.c.b16 %v279, %v277
  %v464 = vpack.c.b16 %v280, %v278
  %v465 = vpack.c.b16 %v283, %v281
  %v466 = vpack.c.b16 %v284, %v282
  %v467 = vpack.c.b16 %v287, %v285
  %v468 = vpack.c.b16 %v288, %v286
  %v469 = vpack.c.b16 %v291, %v289
  %v470 = vpack.c.b16 %v292, %v290
  %v471 = vpack.c.b16 %v295, %v293
  %v472 = vpack.c.b16 %v296, %v294
  %v473 = vpack.c.b16 %v299, %v297
  %v474 = vpack.c.b16 %v300, %v298
  %v475 = vpack.c.b16 %v303, %v301
  %v476 = vpack.c.b16 %v304, %v302
  %v477 = vpack.c.b16 %v307, %v305
  %v478 = vpack.c.b16 %v308, %v306
  %v479 = vpack.c.b16 %v311, %v309
  %v480 = vpack.c.b16 %v312, %v310
  %v481 = vpack.c.b16 %v315, %v313
  %v482 = vpack.c.b16 %v316, %v314
  %v483 = vpack.c.b16 %v319, %v317
  %v484 = vpack.c.b16 %v320, %v318
  %v485 = vpack.c.b16 %v323, %v321
  %v486 = vpack.c.b16 %v324, %v322
  %v487 = vpack.c.b16 %v327, %v325
  %v488 = vpack.c.b16 %v328, %v326
  %v489 = vpack.c.b16 %v331, %v329
  %v490 = vpack.c.b16 %v332, %v330
  %v491 = vpack.c.b16 %v335, %v333
  %v492 = vpack.c.b16 %v336, %v334
  %v493 = vpack.c.b16 %v339, %v337
  %v494 = vpack.c.b16 %v340, %v338
  %v495 = vpack.c.b16 %v343, %v341
  %v496 = vpack.c.b16 %v344, %v342
  %v497 = vpack.c.b16 %v347, %v345
  %v498 = vpack.c.b16 %v348, %v346
  %v499 = vpack.c.b16 %v351, %v349
  %v500 = vpack.c.b16 %v352, %v350
  %v501 = vpack.c.b16 %v355, %v353
  %v502 = vpack.c.b16 %v356, %v354
  %v503 = vpack.c.b16 %v359, %v357
  %v504 = vpack.c.b16 %v360, %v358
  %v505 = vpack.c.b16 %v363, %v361
  %v506 = vpack.c.b16 %v364, %v362
  %v507 = vpack.c.b16 %v367, %v365
  %v508 = vpack.c.b16 %v368, %v366
  %v509 = vpack.c.b16 %v371, %v369
  %v510 = vpack.c.b16 %v372, %v370
  %v511 = vpack.c.b16 %v375, %v373
  %v512 = vpack.c.b16 %v376, %v374
  %v513 = vpack.c.b16 %v379, %v377
  %v514 = vpack.c.b16 %v380, %v378
  %v515 = vpack.c.b16 %v383, %v381
  %v516 = vpack.c.b16 %v384, %v382
  %v517 = vpack.c.b16 %v387, %v385
  %v518 = vpack.c.b16 %v388, %v386
  %v519 = vpack.c.b16 %v391, %v389
  %v520 = vpack.c.b16 %v392, %v390
  %v521 = vpack.c.b16 %v395, %v393
  %v522 = vpack.c.b16 %v396, %v394
  %v523 = vpack.c.b16 %v399, %v397
  %v524 = vpack.c.b16 %v400, %v398
  %v525 = vpack.c.b16 %v403, %v401
  %v526 = vpack.c.b16 %v404, %v402
  %v527 = vpack.c.b16 %v407, %v405
  %v528 = vpack.c.b16 %v408, %v406
  %v529 = vpack.c.b16 %v411, %v409
  %v530 = vpack.c.b16 %v412, %v410
  %v531 = vpack.c.b16 %v415, %v413
  %v532 = vpack.c.b16 %v416, %v414
  %v533 = vpack.c.b16 %v419, %v417
  %v534 = vpack.c.b16 %v420, %v418
  %v535 = vpack.c.b16 %v423, %v421
  %v536 = vpack.c.b16 %v424, %v422
  %v537 = vpack.c.b16 %v427, %v425
  %v538 = vpack.c.b16 %v428, %v426
  %v539 = vpack.c.b16 %v431, %v429
  %v540 = vpack.c.b16 %v432, %v430
  %v541 = vpack.c.b16 %v435, %v433
  %v542 = vpack.c.b16 %v436, %v434
  %v543 = vpack.c.b16 %v439, %v437
  %v544 = vpack.c.b16 %v440, %v438
  %v545 = vpack.c.b16 %v443, %v441
  %v546 = vpack.c.b16 %v444, %v442
  %v547 = vpack.c.b16 %v447, %v445
  %v548 = vpack.c.b16 %v448, %v446
  %v549 = vpack.c.b16 %v451, %v449
  %v550 = vpack.c.b16 %v452, %v450
  %vm649 = vcmask 130048
  %v651 = vsel %vm649, %v152, 0
  %653 = vmatpush.bf16.msra.mxu0 %v467
  %654 = vmatpush.bf16.msra.mxu0 %v465
  %655 = vmatpush.bf16.msra.mxu0 %v463
  %656 = vmatpush.bf16.msra.mxu0 %v461
  %657 = vmatpush.bf16.msra.mxu0 %v459
  %658 = vmatpush.bf16.msra.mxu0 %v457
  %659 = vmatpush.bf16.msra.mxu0 %v455
  %660 = vmatpush.bf16.msra.mxu0 %v453
  %661 = vmatmul.bf16.gmra.mxu0 %v146
  %v662 = vpop.f32.mrf.mxu0
  %v663 = vadd.f32 %v131, %v662
  %v664 = vpop.f32.mrf.mxu0
  %665 = vdwg.mxu0
  %666 = vmatpush.bf16.msra.mxu0 %v483
  %667 = vmatpush.bf16.msra.mxu0 %v481
  %668 = vmatpush.bf16.msra.mxu0 %v479
  %669 = vmatpush.bf16.msra.mxu0 %v477
  %670 = vmatpush.bf16.msra.mxu0 %v475
  %671 = vmatpush.bf16.msra.mxu0 %v473
  %672 = vmatpush.bf16.msra.mxu0 %v471
  %673 = vmatpush.bf16.msra.mxu0 %v469
  %674 = vmatmul.bf16.gmra.mxu0 %v147
  %v675 = vpop.f32.mrf.mxu0
  %v676 = vadd.f32 %v663, %v675
  %v677 = vpop.f32.mrf.mxu0
  %678 = vdwg.mxu0
  %679 = vmatpush.bf16.msra.mxu0 %v499
  %680 = vmatpush.bf16.msra.mxu0 %v497
  %681 = vmatpush.bf16.msra.mxu0 %v495
  %682 = vmatpush.bf16.msra.mxu0 %v493
  %683 = vmatpush.bf16.msra.mxu0 %v491
  %684 = vmatpush.bf16.msra.mxu0 %v489
  %685 = vmatpush.bf16.msra.mxu0 %v487
  %686 = vmatpush.bf16.msra.mxu0 %v485
  %687 = vmatmul.bf16.gmra.mxu0 %v148
  %v688 = vpop.f32.mrf.mxu0
  %v689 = vadd.f32 %v676, %v688
  %v690 = vpop.f32.mrf.mxu0
  %691 = vdwg.mxu0
  %692 = vmatpush.bf16.msra.mxu0 %v515
  %693 = vmatpush.bf16.msra.mxu0 %v513
  %694 = vmatpush.bf16.msra.mxu0 %v511
  %695 = vmatpush.bf16.msra.mxu0 %v509
  %696 = vmatpush.bf16.msra.mxu0 %v507
  %697 = vmatpush.bf16.msra.mxu0 %v505
  %698 = vmatpush.bf16.msra.mxu0 %v503
  %699 = vmatpush.bf16.msra.mxu0 %v501
  %700 = vmatmul.bf16.gmra.mxu0 %v149
  %v701 = vpop.f32.mrf.mxu0
  %v702 = vadd.f32 %v689, %v701
  %v703 = vpop.f32.mrf.mxu0
  %704 = vdwg.mxu0
  %705 = vmatpush.bf16.msra.mxu0 %v531
  %706 = vmatpush.bf16.msra.mxu0 %v529
  %707 = vmatpush.bf16.msra.mxu0 %v527
  %708 = vmatpush.bf16.msra.mxu0 %v525
  %709 = vmatpush.bf16.msra.mxu0 %v523
  %710 = vmatpush.bf16.msra.mxu0 %v521
  %711 = vmatpush.bf16.msra.mxu0 %v519
  %712 = vmatpush.bf16.msra.mxu0 %v517
  %713 = vmatmul.bf16.gmra.mxu0 %v150
  %v714 = vpop.f32.mrf.mxu0
  %v715 = vadd.f32 %v702, %v714
  %v716 = vpop.f32.mrf.mxu0
  %717 = vdwg.mxu0
  %718 = vmatpush.bf16.msra.mxu0 %v547
  %719 = vmatpush.bf16.msra.mxu0 %v545
  %720 = vmatpush.bf16.msra.mxu0 %v543
  %721 = vmatpush.bf16.msra.mxu0 %v541
  %722 = vmatpush.bf16.msra.mxu0 %v539
  %723 = vmatpush.bf16.msra.mxu0 %v537
  %724 = vmatpush.bf16.msra.mxu0 %v535
  %725 = vmatpush.bf16.msra.mxu0 %v533
  %726 = vmatmul.bf16.gmra.mxu0 %v151
  %v727 = vpop.f32.mrf.mxu0
  %v728 = vadd.f32 %v715, %v727
  %v729 = vpop.f32.mrf.mxu0
  %730 = vdwg.mxu0
  %731 = vmatpush.bf16.msra.mxu0 0
  %732 = vmatpush.bf16.msra.mxu0 0
  %733 = vmatpush.bf16.msra.mxu0 0
  %734 = vmatpush.bf16.msra.mxu0 0
  %735 = vmatpush.bf16.msra.mxu0 0
  %736 = vmatpush.bf16.msra.mxu0 0
  %737 = vmatpush.bf16.msra.mxu0 0
  %738 = vmatpush.bf16.msra.mxu0 %v549
  %739 = vmatmul.bf16.gmra.mxu0 %v651
  %v740 = vpop.f32.mrf.mxu0
  %v741 = vadd.f32 %v728, %v740
  %v742 = vpop.f32.mrf.mxu0
  %743 = vdwg.mxu0
  %744 = vmatpush.bf16.msra.mxu0 %v468
  %745 = vmatpush.bf16.msra.mxu0 %v466
  %746 = vmatpush.bf16.msra.mxu0 %v464
  %747 = vmatpush.bf16.msra.mxu0 %v462
  %748 = vmatpush.bf16.msra.mxu0 %v460
  %749 = vmatpush.bf16.msra.mxu0 %v458
  %750 = vmatpush.bf16.msra.mxu0 %v456
  %751 = vmatpush.bf16.msra.mxu0 %v454
  %752 = vmatmul.bf16.gmra.mxu0 %v146
  %v753 = vpop.f32.mrf.mxu0
  %v754 = vadd.f32 %v132, %v753
  %v755 = vpop.f32.mrf.mxu0
  %756 = vdwg.mxu0
  %757 = vmatpush.bf16.msra.mxu0 %v484
  %758 = vmatpush.bf16.msra.mxu0 %v482
  %759 = vmatpush.bf16.msra.mxu0 %v480
  %760 = vmatpush.bf16.msra.mxu0 %v478
  %761 = vmatpush.bf16.msra.mxu0 %v476
  %762 = vmatpush.bf16.msra.mxu0 %v474
  %763 = vmatpush.bf16.msra.mxu0 %v472
  %764 = vmatpush.bf16.msra.mxu0 %v470
  %765 = vmatmul.bf16.gmra.mxu0 %v147
  %v766 = vpop.f32.mrf.mxu0
  %v767 = vadd.f32 %v754, %v766
  %v768 = vpop.f32.mrf.mxu0
  %769 = vdwg.mxu0
  %770 = vmatpush.bf16.msra.mxu0 %v500
  %771 = vmatpush.bf16.msra.mxu0 %v498
  %772 = vmatpush.bf16.msra.mxu0 %v496
  %773 = vmatpush.bf16.msra.mxu0 %v494
  %774 = vmatpush.bf16.msra.mxu0 %v492
  %775 = vmatpush.bf16.msra.mxu0 %v490
  %776 = vmatpush.bf16.msra.mxu0 %v488
  %777 = vmatpush.bf16.msra.mxu0 %v486
  %778 = vmatmul.bf16.gmra.mxu0 %v148
  %v779 = vpop.f32.mrf.mxu0
  %v780 = vadd.f32 %v767, %v779
  %v781 = vpop.f32.mrf.mxu0
  %782 = vdwg.mxu0
  %783 = vmatpush.bf16.msra.mxu0 %v516
  %784 = vmatpush.bf16.msra.mxu0 %v514
  %785 = vmatpush.bf16.msra.mxu0 %v512
  %786 = vmatpush.bf16.msra.mxu0 %v510
  %787 = vmatpush.bf16.msra.mxu0 %v508
  %788 = vmatpush.bf16.msra.mxu0 %v506
  %789 = vmatpush.bf16.msra.mxu0 %v504
  %790 = vmatpush.bf16.msra.mxu0 %v502
  %791 = vmatmul.bf16.gmra.mxu0 %v149
  %v792 = vpop.f32.mrf.mxu0
  %v793 = vadd.f32 %v780, %v792
  %v794 = vpop.f32.mrf.mxu0
  %795 = vdwg.mxu0
  %796 = vmatpush.bf16.msra.mxu0 %v532
  %797 = vmatpush.bf16.msra.mxu0 %v530
  %798 = vmatpush.bf16.msra.mxu0 %v528
  %799 = vmatpush.bf16.msra.mxu0 %v526
  %800 = vmatpush.bf16.msra.mxu0 %v524
  %801 = vmatpush.bf16.msra.mxu0 %v522
  %802 = vmatpush.bf16.msra.mxu0 %v520
  %803 = vmatpush.bf16.msra.mxu0 %v518
  %804 = vmatmul.bf16.gmra.mxu0 %v150
  %v805 = vpop.f32.mrf.mxu0
  %v806 = vadd.f32 %v793, %v805
  %v807 = vpop.f32.mrf.mxu0
  %808 = vdwg.mxu0
  %809 = vmatpush.bf16.msra.mxu0 %v548
  %810 = vmatpush.bf16.msra.mxu0 %v546
  %811 = vmatpush.bf16.msra.mxu0 %v544
  %812 = vmatpush.bf16.msra.mxu0 %v542
  %813 = vmatpush.bf16.msra.mxu0 %v540
  %814 = vmatpush.bf16.msra.mxu0 %v538
  %815 = vmatpush.bf16.msra.mxu0 %v536
  %816 = vmatpush.bf16.msra.mxu0 %v534
  %817 = vmatmul.bf16.gmra.mxu0 %v151
  %v818 = vpop.f32.mrf.mxu0
  %v819 = vadd.f32 %v806, %v818
  %v820 = vpop.f32.mrf.mxu0
  %821 = vdwg.mxu0
  %822 = vmatpush.bf16.msra.mxu0 0
  %823 = vmatpush.bf16.msra.mxu0 0
  %824 = vmatpush.bf16.msra.mxu0 0
  %825 = vmatpush.bf16.msra.mxu0 0
  %826 = vmatpush.bf16.msra.mxu0 0
  %827 = vmatpush.bf16.msra.mxu0 0
  %828 = vmatpush.bf16.msra.mxu0 0
  %829 = vmatpush.bf16.msra.mxu0 %v550
  %830 = vmatmul.bf16.gmra.mxu0 %v651
  %v831 = vpop.f32.mrf.mxu0
  %v832 = vadd.f32 %v819, %v831
  %v833 = vpop.f32.mrf.mxu0
  %834 = vdwg.mxu0
  %v835 = vmax.f32 %v741, 0.0
  %v836 = vmax.f32 %v832, 0.0
  %v837 = vpack.c.bf16 %v835, %v835
  %v838 = vpack.c.bf16 %v836, %v836
  %v839 = vld [vmem:[%s3] sm:$0xf]
  %v840 = vld [vmem:[%s3 + $0x4] sm:$0xf]
  %v841 = vld [vmem:[%s3 + $0x8] sm:$0xf]
  %v842 = vld [vmem:[%s3 + $0xc] sm:$0xf]
  %v843 = vld [vmem:[%s3 + $0x10] sm:$0xf]
  %v844 = vld [vmem:[%s3 + $0x14] sm:$0xf]
  %v845 = vld [vmem:[%s3 + $0x18] sm:$0xf]
  %v846 = vld [vmem:[%s3 + $0x1c] sm:$0xf]
  %v847 = vld [vmem:[%s3 + $0x20] sm:$0xf]
  %v848 = vld [vmem:[%s3 + $0x24] sm:$0xf]
  %v849 = vld [vmem:[%s3 + $0x28] sm:$0xf]
  %v850 = vld [vmem:[%s3 + $0x2c] sm:$0xf]
  %v851 = vld [vmem:[%s3 + $0x30] sm:$0xf]
  %v852 = vld [vmem:[%s3 + $0x34] sm:$0xf]
  %v853 = vld [vmem:[%s3 + $0x38] sm:$0xf]
  %v854 = vld [vmem:[%s3 + $0x3c] sm:$0xf]
  %v855 = vld [vmem:[%s3 + $0x40] sm:$0xf]
  %v856 = vld [vmem:[%s3 + $0x44] sm:$0xf]
  %v857 = vld [vmem:[%s3 + $0x48] sm:$0xf]
  %v858 = vld [vmem:[%s3 + $0x4c] sm:$0xf]
  %v859 = vld [vmem:[%s3 + $0x50] sm:$0xf]
  %v860 = vld [vmem:[%s3 + $0x54] sm:$0xf]
  %v861 = vld [vmem:[%s3 + $0x58] sm:$0xf]
  %v862 = vld [vmem:[%s3 + $0x5c] sm:$0xf]
  %v863 = vld [vmem:[%s3 + $0x60] sm:$0xf]
  %v864 = vld [vmem:[%s3 + $0x64] sm:$0xf]
  %v865 = vld [vmem:[%s3 + $0x68] sm:$0xf]
  %v866 = vld [vmem:[%s3 + $0x6c] sm:$0xf]
  %v867 = vld [vmem:[%s3 + $0x70] sm:$0xf]
  %v868 = vld [vmem:[%s3 + $0x74] sm:$0xf]
  %v869 = vld [vmem:[%s3 + $0x78] sm:$0xf]
  %v870 = vld [vmem:[%s3 + $0x7c] sm:$0xf]
  %v871 = vld [vmem:[%s4] sm:$0x1]
  %v873 = vperm.slane %v871, 0
  %v907 = vunpack.c.l.b16 %v839
  %v908 = vunpack.c.l.b16 %v840
  %v909 = vunpack.c.l.b16 %v841
  %v910 = vunpack.c.l.b16 %v842
  %v911 = vunpack.c.l.b16 %v843
  %v912 = vunpack.c.l.b16 %v844
  %v913 = vunpack.c.l.b16 %v845
  %v914 = vunpack.c.l.b16 %v846
  %v915 = vunpack.c.l.b16 %v847
  %v916 = vunpack.c.l.b16 %v848
  %v917 = vunpack.c.l.b16 %v849
  %v918 = vunpack.c.l.b16 %v850
  %v919 = vunpack.c.l.b16 %v851
  %v920 = vunpack.c.l.b16 %v852
  %v921 = vunpack.c.l.b16 %v853
  %v922 = vunpack.c.l.b16 %v854
  %v923 = vunpack.c.l.b16 %v855
  %v924 = vunpack.c.l.b16 %v856
  %v925 = vunpack.c.l.b16 %v857
  %v926 = vunpack.c.l.b16 %v858
  %v927 = vunpack.c.l.b16 %v859
  %v928 = vunpack.c.l.b16 %v860
  %v929 = vunpack.c.l.b16 %v861
  %v930 = vunpack.c.l.b16 %v862
  %v931 = vunpack.c.l.b16 %v863
  %v932 = vunpack.c.l.b16 %v864
  %v933 = vunpack.c.l.b16 %v865
  %v934 = vunpack.c.l.b16 %v866
  %v935 = vunpack.c.l.b16 %v867
  %v936 = vunpack.c.l.b16 %v868
  %v937 = vunpack.c.l.b16 %v869
  %v938 = vunpack.c.l.b16 %v870
  %v939 = vpack.c.b16 %v908, %v907
  %v940 = vpack.c.b16 %v910, %v909
  %v941 = vpack.c.b16 %v912, %v911
  %v942 = vpack.c.b16 %v914, %v913
  %v943 = vpack.c.b16 %v916, %v915
  %v944 = vpack.c.b16 %v918, %v917
  %v945 = vpack.c.b16 %v920, %v919
  %v946 = vpack.c.b16 %v922, %v921
  %v947 = vpack.c.b16 %v924, %v923
  %v948 = vpack.c.b16 %v926, %v925
  %v949 = vpack.c.b16 %v928, %v927
  %v950 = vpack.c.b16 %v930, %v929
  %v951 = vpack.c.b16 %v932, %v931
  %v952 = vpack.c.b16 %v934, %v933
  %v953 = vpack.c.b16 %v936, %v935
  %v954 = vpack.c.b16 %v938, %v937
  %971 = vmatpush.bf16.msra.mxu0 %v946
  %972 = vmatpush.bf16.msra.mxu0 %v945
  %973 = vmatpush.bf16.msra.mxu0 %v944
  %974 = vmatpush.bf16.msra.mxu0 %v943
  %975 = vmatpush.bf16.msra.mxu0 %v942
  %976 = vmatpush.bf16.msra.mxu0 %v941
  %977 = vmatpush.bf16.msra.mxu0 %v940
  %978 = vmatpush.bf16.msra.mxu0 %v939
  %979 = vmatmul.bf16.gmra.mxu0 %v837
  %v980 = vpop.f32.mrf.mxu0
  %v981 = vadd.f32 %v873, %v980
  %v982 = vpop.f32.mrf.mxu0
  %983 = vdwg.mxu0
  %984 = vmatpush.bf16.msra.mxu0 %v954
  %985 = vmatpush.bf16.msra.mxu0 %v953
  %986 = vmatpush.bf16.msra.mxu0 %v952
  %987 = vmatpush.bf16.msra.mxu0 %v951
  %988 = vmatpush.bf16.msra.mxu0 %v950
  %989 = vmatpush.bf16.msra.mxu0 %v949
  %990 = vmatpush.bf16.msra.mxu0 %v948
  %991 = vmatpush.bf16.msra.mxu0 %v947
  %992 = vmatmul.bf16.gmra.mxu0 %v838
  %v993 = vpop.f32.mrf.mxu0
  %v994 = vadd.f32 %v981, %v993
  %v995 = vpop.f32.mrf.mxu0
  %996 = vdwg.mxu0
  %v997 = vmax.f32 %v994, 0.0
  %v998 = vpack.c.bf16 %v997, %v997
  %v999 = vld [vmem:[%s5] sm:$0xf]
  %v1000 = vld [vmem:[%s5 + $0x4] sm:$0xf]
  %v1001 = vld [vmem:[%s5 + $0x8] sm:$0xf]
  %v1002 = vld [vmem:[%s5 + $0xc] sm:$0xf]
  %v1003 = vld [vmem:[%s5 + $0x10] sm:$0xf]
  %v1004 = vld [vmem:[%s5 + $0x14] sm:$0xf]
  %v1005 = vld [vmem:[%s5 + $0x18] sm:$0xf]
  %v1006 = vld [vmem:[%s5 + $0x1c] sm:$0xf]
  %v1007 = vld [vmem:[%s5 + $0x20] sm:$0xf]
  %v1008 = vld [vmem:[%s5 + $0x24] sm:$0xf]
  %v1009 = vld [vmem:[%s5 + $0x28] sm:$0xf]
  %v1010 = vld [vmem:[%s5 + $0x2c] sm:$0xf]
  %v1011 = vld [vmem:[%s5 + $0x30] sm:$0xf]
  %v1012 = vld [vmem:[%s5 + $0x34] sm:$0xf]
  %v1013 = vld [vmem:[%s5 + $0x38] sm:$0xf]
  %v1014 = vld [vmem:[%s5 + $0x3c] sm:$0xf]
  %v1015 = vld [vmem:[%s6] sm:$0x1]
  %v1017 = vperm.slane %v1015, 0
  %v1035 = vunpack.c.l.b16 %v999
  %v1036 = vunpack.c.l.b16 %v1000
  %v1037 = vunpack.c.l.b16 %v1001
  %v1038 = vunpack.c.l.b16 %v1002
  %v1039 = vunpack.c.l.b16 %v1003
  %v1040 = vunpack.c.l.b16 %v1004
  %v1041 = vunpack.c.l.b16 %v1005
  %v1042 = vunpack.c.l.b16 %v1006
  %v1043 = vunpack.c.l.b16 %v1007
  %v1044 = vunpack.c.l.b16 %v1008
  %v1045 = vunpack.c.l.b16 %v1009
  %v1046 = vunpack.c.l.b16 %v1010
  %v1047 = vunpack.c.l.b16 %v1011
  %v1048 = vunpack.c.l.b16 %v1012
  %v1049 = vunpack.c.l.b16 %v1013
  %v1050 = vunpack.c.l.b16 %v1014
  %v1051 = vpack.c.b16 %v1036, %v1035
  %v1052 = vpack.c.b16 %v1038, %v1037
  %v1053 = vpack.c.b16 %v1040, %v1039
  %v1054 = vpack.c.b16 %v1042, %v1041
  %v1055 = vpack.c.b16 %v1044, %v1043
  %v1056 = vpack.c.b16 %v1046, %v1045
  %v1057 = vpack.c.b16 %v1048, %v1047
  %v1058 = vpack.c.b16 %v1050, %v1049
  %1067 = vmatpush.bf16.msra.mxu0 %v1058
  %1068 = vmatpush.bf16.msra.mxu0 %v1057
  %1069 = vmatpush.bf16.msra.mxu0 %v1056
  %1070 = vmatpush.bf16.msra.mxu0 %v1055
  %1071 = vmatpush.bf16.msra.mxu0 %v1054
  %1072 = vmatpush.bf16.msra.mxu0 %v1053
  %1073 = vmatpush.bf16.msra.mxu0 %v1052
  %1074 = vmatpush.bf16.msra.mxu0 %v1051
  %1075 = vmatmul.bf16.gmra.mxu0 %v998
  %v1076 = vpop.f32.mrf.mxu0
  %v1077 = vadd.f32 %v1017, %v1076
  %v1078 = vpop.f32.mrf.mxu0
  %1079 = vdwg.mxu0
  %v1080 = vpack.c.bf16 %v1077, %v1077
  %1081 = vst [vmem:[%s7] sm:$0xf] %v1080
  // Predicated region
  $region30: #{fed_model_forward.1} parent=0 // pred_check
    _
  $region31: #{fed_model_forward.1} parent=0 // pred_check_branch
    %1083 = sbr.rel (0) target = $region33
  $region32: #{fed_model_forward.1} parent=0 // pred_region
    _
  $region33: #{fed_model_forward.1} parent=0 // pred_fallthru
    _
  // Predicated region
  $region34: #{fed_model_forward.1} parent=0 // pred_check
    _
  $region35: #{fed_model_forward.1} parent=0 // pred_check_branch
    %1085 = sbr.rel (0) target = $region37
  $region36: #{fed_model_forward.1} parent=0 // pred_region
    _
  $region37: #{fed_model_forward.1} parent=0 // pred_fallthru
    _

</llo_original>
